<compile_context>
chip_gen: v6e
topology: v6e:2x2x1
jax: 0.10.0
libtpu: 0.0.40
codegen_flags: <defaults>
</compile_context>

<pallas_src>
import functools
from typing import NamedTuple

import jax
import jax.numpy as jnp
import numpy as np
from jax.experimental import pallas as pl
from jax.experimental.pallas import tpu as pltpu


def _round_up(x: int, m: int) -> int:
    return ((x + m - 1) // m) * m


class MLPDims(NamedTuple):
    d: int    # true input_size
    h: int    # true hidden (64)
    a: int    # true nb_action
    dp: int   # padded input_size (contraction dim of dot #1), multiple of 16
    lw: int   # slab lane width = padded hidden = padded nb_action (128)


# ---------------------------------------------------------------------------
# Kernel: one batch tile of the fused MLP.  Parameter slab row layout
# (all rows are `lw` lanes wide, every section starts on a 16-row boundary):
#   [0          : dp        )  W1  (dp, lw)
#   [dp         : dp+16     )  b1  in row dp (15 zero padding rows)
#   [dp+16      : dp+16+lw  )  W2  (lw, lw)   -- zero rows beyond h left in
#   [dp+16+lw   : dp+32+lw  )  b2  in row dp+16+lw
# ---------------------------------------------------------------------------
def _mlp_kernel(x_ref, p_ref, out_ref, *, dp, w2_start, lw):
    w1 = p_ref[0:dp, :]                                # (dp, lw)
    b1 = p_ref[dp:dp + 1, :].astype(jnp.float32)       # (1, lw)
    w2 = p_ref[w2_start:w2_start + lw, :]              # (lw, lw)
    b2 = p_ref[w2_start + lw:w2_start + lw + 1, :].astype(jnp.float32)

    x = x_ref[...]                                     # (tb, dp)
    # dot #1 on the MXU (tiny K, padded for free inside vregs), f32 accum
    h = jnp.dot(x, w1, preferred_element_type=jnp.float32)
    # bias + ReLU epilogue in f32 on the VPU
    h = jnp.maximum(h + b1, 0.0)
    # dot #2 on the MXU, K=128 (MXU-native; zero half of W2 is intentional)
    q = jnp.dot(h.astype(w2.dtype), w2, preferred_element_type=jnp.float32)
    out_ref[...] = (q + b2).astype(out_ref.dtype)


# ---------------------------------------------------------------------------
# Setup-time parameter packing (done ONCE, reused every forward call).
# Weights are stored (in_features, out_features); PyTorch's (out, in) layout
# would be transposed here once.
# ---------------------------------------------------------------------------
def pack_params(w1, b1, w2, b2, compute_dtype=jnp.float32):
    d, h = w1.shape
    h2, a = w2.shape
    assert h == h2
    dp = _round_up(d, 16)                               # tiny contraction pad
    lw = max(_round_up(h, 128), _round_up(a, 128))      # shared lane width

    slab = np.zeros((dp + 16 + lw + 16, lw), dtype=np.float32)
    slab[:d, :h] = np.asarray(w1, np.float32)
    slab[dp, :h] = np.asarray(b1, np.float32)
    slab[dp + 16:dp + 16 + h, :a] = np.asarray(w2, np.float32)
    slab[dp + 16 + lw, :a] = np.asarray(b2, np.float32)
    return jnp.asarray(slab, compute_dtype), MLPDims(d=d, h=h, a=a, dp=dp, lw=lw)


# ---------------------------------------------------------------------------
# Forward pass.  num_tiles=1 (default) -> single grid step: best on v5e/v6e.
# num_tiles=2 -> two "parallel" batch tiles so v7x shards across its 2 TCs.
# ---------------------------------------------------------------------------
@functools.partial(jax.jit, static_argnames=("dims", "num_tiles"))
def network_forward(state, param_slab, dims: MLPDims, num_tiles: int = 1):
    d, a, dp, lw = dims.d, dims.a, dims.dp, dims.lw
    B = state.shape[0]
    dt = param_slab.dtype

    # bf16 packs 2 rows per sublane -> keep batch tiles (16,128)-aligned.
    row_align = 16 if dt == jnp.bfloat16 else 8
    bp0 = _round_up(max(B, row_align), row_align)
    tb = _round_up(pl.cdiv(bp0, num_tiles), row_align)
    bp = tb * num_tiles

    x = state.astype(dt)
    if bp != B or dp != d:
        # Tiny pad (dp is 16 lanes, not 128): negligible HBM round-trip.
        x = jnp.pad(x, ((0, bp - B), (0, dp - d)))

    out = pl.pallas_call(
        functools.partial(_mlp_kernel, dp=dp, w2_start=dp + 16, lw=lw),
        out_shape=jax.ShapeDtypeStruct((bp, lw), dt),   # lane-dense, kernel dtype
        grid=(num_tiles,),
        in_specs=[
            pl.BlockSpec((tb, dp), lambda i: (i, 0)),          # batch tile of states
            pl.BlockSpec(param_slab.shape, lambda i: (0, 0)),  # slab resident
        ],
        out_specs=pl.BlockSpec((tb, lw), lambda i: (i, 0)),
        compiler_params=pltpu.CompilerParams(
            dimension_semantics=("parallel",)),
    )(x, param_slab)

    return out[:B, :a]


def init_params(key, input_size, nb_action):
    """Deterministic init mimicking nn.Linear's uniform(-1/sqrt(fan_in), ...)."""
    k1, k2, k3, k4 = jax.random.split(key, 4)
    lim1 = 1.0 / np.sqrt(input_size)
    lim2 = 1.0 / np.sqrt(64)
    w1 = jax.random.uniform(k1, (input_size, 64), jnp.float32, -lim1, lim1)
    b1 = jax.random.uniform(k2, (64,), jnp.float32, -lim1, lim1)
    w2 = jax.random.uniform(k3, (64, nb_action), jnp.float32, -lim2, lim2)
    b2 = jax.random.uniform(k4, (nb_action,), jnp.float32, -lim2, lim2)
    return w1, b1, w2, b2


if __name__ == "__main__":
    key = jax.random.PRNGKey(0)
    k_params, k_state, k_state2 = jax.random.split(key, 3)

    input_size = 5     # classic DQN "self-driving car" state size
    nb_action = 3

    w1, b1, w2, b2 = init_params(k_params, input_size, nb_action)

    # ---- small f32 run: exact parity with the PyTorch-style reference ----
    slab_f32, dims = pack_params(w1, b1, w2, b2, compute_dtype=jnp.float32)
    state_small = jax.random.normal(k_state, (8, input_size), jnp.float32)
    q_small = network_forward(state_small, slab_f32, dims)          # grid=(1,)
    jax.block_until_ready(q_small)
    ref_small = jnp.maximum(state_small @ w1 + b1, 0.0) @ w2 + b2
    np.testing.assert_allclose(np.asarray(q_small), np.asarray(ref_small),
                               rtol=1e-5, atol=1e-5)

    # ---- bf16 run: 2 parallel batch tiles (v7x 2-TC sharding path) ----
    slab_bf16, dims_bf16 = pack_params(w1, b1, w2, b2, compute_dtype=jnp.bfloat16)
    state_big = jax.random.normal(k_state2, (32, input_size), jnp.float32)
    q_big = network_forward(state_big, slab_bf16, dims_bf16, num_tiles=2)
    jax.block_until_ready(q_big)
    ref_big = jnp.maximum(state_big @ w1 + b1, 0.0) @ w2 + b2
    np.testing.assert_allclose(np.asarray(q_big, np.float32),
                               np.asarray(ref_big), rtol=3e-2, atol=3e-2)

    print("KERNEL_OK")
</pallas_src>

<mosaic_0001>
module attributes {stable_mosaic.version = 11 : i64} {
  func.func @_mlp_kernel(%arg0: i32, %arg1: memref<8x16xf32, #tpu.memory_space<vmem>>, %arg2: memref<176x128xf32, #tpu.memory_space<vmem>>, %arg3: memref<8x128xf32, #tpu.memory_space<vmem>>) attributes {dimension_semantics = [#tpu.dimension_semantics<parallel>], iteration_bounds = array<i64: 1>, scalar_prefetch = 0 : i64, scratch_operands = 0 : i64, tpu.core_type = #tpu.core_type<tc>, window_params = [{transform_indices = @transform_0, window_bounds = array<i64: 8, 16>}, {pipeline_mode = #tpu.pipeline_mode<synchronous>, transform_indices = @transform_1, window_bounds = array<i64: 176, 128>}, {transform_indices = @transform_2, window_bounds = array<i64: 8, 128>}]} {
    %c0 = arith.constant 0 : index
    %c0_0 = arith.constant 0 : index
    %0 = vector.load %arg2[%c0, %c0_0] : memref<176x128xf32, #tpu.memory_space<vmem>>, vector<16x128xf32>
    %c16 = arith.constant 16 : index
    %c0_1 = arith.constant 0 : index
    %1 = vector.load %arg2[%c16, %c0_1] : memref<176x128xf32, #tpu.memory_space<vmem>>, vector<1x128xf32>
    %c32 = arith.constant 32 : index
    %c0_2 = arith.constant 0 : index
    %2 = vector.load %arg2[%c32, %c0_2] : memref<176x128xf32, #tpu.memory_space<vmem>>, vector<128x128xf32>
    %c160 = arith.constant 160 : index
    %c0_3 = arith.constant 0 : index
    %3 = vector.load %arg2[%c160, %c0_3] : memref<176x128xf32, #tpu.memory_space<vmem>>, vector<1x128xf32>
    %c0_4 = arith.constant 0 : index
    %c0_5 = arith.constant 0 : index
    %4 = vector.load %arg1[%c0_4, %c0_5] : memref<8x16xf32, #tpu.memory_space<vmem>>, vector<8x16xf32>
    %cst = arith.constant dense<0.000000e+00> : vector<8x128xf32>
    %5 = tpu.matmul %4, %0, %cst {dimension_numbers = #tpu.dot_dimension_numbers<[1], [0], [0], [1], [0, 0, 1, 1], [], []>} : vector<8x16xf32>, vector<16x128xf32>, vector<8x128xf32> -> vector<8x128xf32>
    %6 = vector.broadcast %1 : vector<1x128xf32> to vector<8x128xf32>
    %7 = arith.addf %5, %6 : vector<8x128xf32>
    %cst_6 = arith.constant 0.000000e+00 : f32
    %8 = vector.broadcast %cst_6 : f32 to vector<8x128xf32>
    %9 = arith.maximumf %7, %8 : vector<8x128xf32>
    %cst_7 = arith.constant dense<0.000000e+00> : vector<8x128xf32>
    %10 = tpu.matmul %9, %2, %cst_7 {dimension_numbers = #tpu.dot_dimension_numbers<[1], [0], [0], [1], [0, 0, 1, 1], [], []>} : vector<8x128xf32>, vector<128x128xf32>, vector<8x128xf32> -> vector<8x128xf32>
    %11 = vector.broadcast %3 : vector<1x128xf32> to vector<8x128xf32>
    %12 = arith.addf %10, %11 : vector<8x128xf32>
    %c0_8 = arith.constant 0 : index
    %c0_9 = arith.constant 0 : index
    %13 = vector.load %arg3[%c0_8, %c0_9] : memref<8x128xf32, #tpu.memory_space<vmem>>, vector<8x128xf32>
    tpu.vector_store %arg3[%c0_8, %c0_9], %12 {strides = array<i32>} : memref<8x128xf32, #tpu.memory_space<vmem>>, vector<8x128xf32>,
    return
  }
  func.func @transform_0(%arg0: i32) -> (i32, i32) {
    %c0_i32 = arith.constant 0 : i32
    %c0_i32_0 = arith.constant 0 : i32
    return %arg0, %c0_i32 : i32, i32
  }
  func.func @transform_1(%arg0: i32) -> (i32, i32) {
    %c0_i32 = arith.constant 0 : i32
    %c0_i32_0 = arith.constant 0 : i32
    %c0_i32_1 = arith.constant 0 : i32
    return %c0_i32, %c0_i32_0 : i32, i32
  }
  func.func @transform_2(%arg0: i32) -> (i32, i32) {
    %c0_i32 = arith.constant 0 : i32
    %c0_i32_0 = arith.constant 0 : i32
    return %arg0, %c0_i32 : i32, i32
  }
}

</mosaic_0001>

<llo_original>
// kernel: network_forward.1
$region0: #{network_forward.1}
  #allocation0 [shape = 'u32[]', space=smem, size = 0x4, offset = 0x4, fixed_abs, tag = 'smem constant byte address 0x4 - core index']
  #allocation1 [shape = 'u32[144,128]{1,0:T(1,128)}', space=vmem, size = 0x12000, scoped, tag = 'internal scratch']
  %s0 = inlined_call_operand.vmem [shape: f32[8,16], index: 0, kind: input, shape index: {}]
  %s1 = inlined_call_operand.hbm [shape: f32[176,128], index: 1, kind: input, shape index: {}]
  %s2 = inlined_call_operand.vmem [shape: f32[8,128], index: 2, kind: output, shape index: {}]
  %s3 = sld [smem:[#allocation0]]
  $region22: #{network_forward.1} parent=0
    _
  %s5 = ssub.s32 1, %s3
  %s6 = scalar_select 0, %s5, %s3
  $region1: #{network_forward.1} parent=0
    #allocation2 [shape = 'u8[90112]{0}', space=vmem, size = 0x16000, scoped, tag = 'input window, operand 1, single buffered']
    #allocation3 [shape = 's32[1]{0}', space=sflag, size = 0x4, scoped, tag = 'scoped memory for network_forward.1']
    %7 = vsyncpa [#allocation3], 0
    // Predicated region
    $region2: #{network_forward.1} parent=1 // pred_check
      _
    $region3: #{network_forward.1} parent=1 // pred_check_branch
      %9 = sbr.rel (0) target = $region5
    $region4: #{network_forward.1} parent=1 // pred_region
      _
    $region5: #{network_forward.1} parent=1 // pred_fallthru
      _
    // Predicated region
    $region6: #{network_forward.1} parent=1 // pred_check
      _
    $region7: #{network_forward.1} parent=1 // pred_check_branch
      %11 = sbr.rel (0) target = $region9
    $region8: #{network_forward.1} parent=1 // pred_region
      %s13 = ssub.s32 2816, 2816
      %14 = vsyncadd [#allocation3], %s13
      %s15 = sshll.u32 [#allocation2], 4
      %s16 = int_to_ptr.vmem [resolvable:$true] %s15
      %21 = dma.hbm_to_vmem [thread:$0]  %s1, 2816, %s16, [#allocation3], 128, 128, 8
    $region9: #{network_forward.1} parent=1 // pred_fallthru
      _
    // Predicated region
    $region10: #{network_forward.1} parent=1 // pred_check
      _
    $region11: #{network_forward.1} parent=1 // pred_check_branch
      %23 = sbr.rel (0) target = $region13
    $region12: #{network_forward.1} parent=1 // pred_region
      %24 = dma.done [#allocation3], 2816
    $region13: #{network_forward.1} parent=1 // pred_fallthru
      _
    %v25 = vld [vmem:[#allocation2] sm:$0xff]
    %v26 = vld [vmem:[#allocation2 + $0x8] sm:$0xff]
    %v27 = vld [vmem:[#allocation2 + $0x10] sm:$0x1]
    %v28 = vld [vmem:[#allocation2 + $0x20] sm:$0xff]
    %v29 = vld [vmem:[#allocation2 + $0x28] sm:$0xff]
    %v30 = vld [vmem:[#allocation2 + $0x30] sm:$0xff]
    %v31 = vld [vmem:[#allocation2 + $0x38] sm:$0xff]
    %v32 = vld [vmem:[#allocation2 + $0x40] sm:$0xff]
    %v33 = vld [vmem:[#allocation2 + $0x48] sm:$0xff]
    %v34 = vld [vmem:[#allocation2 + $0x50] sm:$0xff]
    %v35 = vld [vmem:[#allocation2 + $0x58] sm:$0xff]
    %v36 = vld [vmem:[#allocation2 + $0x60] sm:$0xff]
    %v37 = vld [vmem:[#allocation2 + $0x68] sm:$0xff]
    %v38 = vld [vmem:[#allocation2 + $0x70] sm:$0xff]
    %v39 = vld [vmem:[#allocation2 + $0x78] sm:$0xff]
    %v40 = vld [vmem:[#allocation2 + $0x80] sm:$0xff]
    %v41 = vld [vmem:[#allocation2 + $0x88] sm:$0xff]
    %v42 = vld [vmem:[#allocation2 + $0x90] sm:$0xff]
    %v43 = vld [vmem:[#allocation2 + $0x98] sm:$0xff]
    %v44 = vld [vmem:[#allocation2 + $0xa0] sm:$0x1]
    %v45 = vld [vmem:[%s0] sm:$0xff]
    %v46 = vlaneseq
    %v47 = vshrl.u32 %v46, 7
    %v48 = vsub.s32 0, %v47
    %v49 = vrot.slane %v27, %v48
    %vm50 = vcmask 130048
    %v52 = vsel %vm50, %v45, 0
    %54 = vmatprep.subr.mxu0 0.0
    %55 = vmatpush1.msra.mxu0 0.0
    %56 = vmatprep.subr.mxu0 0.0
    %57 = vmatpush1.msra.mxu0 0.0
    %58 = vmatprep.subr.mxu0 0.0
    %59 = vmatpush1.msra.mxu0 0.0
    %60 = vmatprep.subr.mxu0 0.0
    %61 = vmatpush1.msra.mxu0 0.0
    %62 = vmatprep.subr.mxu0 0.0
    %63 = vmatpush1.msra.mxu0 0.0
    %64 = vmatprep.subr.mxu0 0.0
    %65 = vmatpush1.msra.mxu0 0.0
    %66 = vmatprep.subr.mxu0 0.0
    %67 = vmatpush1.msra.mxu0 0.0
    %68 = vmatprep.subr.mxu0 0.0
    %69 = vmatpush1.msra.mxu0 0.0
    %70 = vmatprep.subr.mxu0 0.0
    %71 = vmatpush1.msra.mxu0 0.0
    %72 = vmatprep.subr.mxu0 0.0
    %73 = vmatpush1.msra.mxu0 0.0
    %74 = vmatprep.subr.mxu0 0.0
    %75 = vmatpush1.msra.mxu0 0.0
    %76 = vmatprep.subr.mxu0 0.0
    %77 = vmatpush1.msra.mxu0 0.0
    %78 = vmatprep.subr.mxu0 0.0
    %79 = vmatpush1.msra.mxu0 0.0
    %80 = vmatprep.subr.mxu0 0.0
    %81 = vmatpush1.msra.mxu0 0.0
    %82 = vmatprep.subr.mxu0 0.0
    %83 = vmatpush1.msra.mxu0 %v26
    %84 = vmatprep.subr.mxu0 0.0
    %85 = vmatpush1.msra.mxu0 %v25
    %86 = vmatprep.subr.mxu0 0.0
    %87 = vmatpush2.msra.mxu0 0.0
    %88 = vmatprep.subr.mxu0 0.0
    %89 = vmatpush2.msra.mxu0 0.0
    %90 = vmatprep.subr.mxu0 0.0
    %91 = vmatpush2.msra.mxu0 0.0
    %92 = vmatprep.subr.mxu0 0.0
    %93 = vmatpush2.msra.mxu0 0.0
    %94 = vmatprep.subr.mxu0 0.0
    %95 = vmatpush2.msra.mxu0 0.0
    %96 = vmatprep.subr.mxu0 0.0
    %97 = vmatpush2.msra.mxu0 0.0
    %98 = vmatprep.subr.mxu0 0.0
    %99 = vmatpush2.msra.mxu0 0.0
    %100 = vmatprep.subr.mxu0 0.0
    %101 = vmatpush2.msra.mxu0 0.0
    %102 = vmatprep.subr.mxu0 0.0
    %103 = vmatpush2.msra.mxu0 0.0
    %104 = vmatprep.subr.mxu0 0.0
    %105 = vmatpush2.msra.mxu0 0.0
    %106 = vmatprep.subr.mxu0 0.0
    %107 = vmatpush2.msra.mxu0 0.0
    %108 = vmatprep.subr.mxu0 0.0
    %109 = vmatpush2.msra.mxu0 0.0
    %110 = vmatprep.subr.mxu0 0.0
    %111 = vmatpush2.msra.mxu0 0.0
    %112 = vmatprep.subr.mxu0 0.0
    %113 = vmatpush2.msra.mxu0 0.0
    %114 = vmatprep.subr.mxu0 0.0
    %115 = vmatpush2.msra.mxu0 0.0
    %116 = vmatprep.subr.mxu0 0.0
    %117 = vmatpush2.msra.mxu0 0.0
    %118 = vmatprep.mubr.f32.mxu0 0.0
    %119 = vmatmul.mubr.f32.gmra.mxu0 %v52
    %v120 = vpop.f32.mrf.mxu0
    %v121 = vadd.f32 %v49, %v120
    %v122 = vpop.f32.mrf.mxu0
    %123 = vdwg.mxu0
    %v124 = vmax.f32 %v121, 0.0
    %v125 = vlaneseq
    %v126 = vshrl.u32 %v125, 7
    %v127 = vsub.s32 0, %v126
    %v128 = vrot.slane %v44, %v127
    %129 = vmatprep.subr.mxu0 0.0
    %130 = vmatpush1.msra.mxu0 %v43
    %131 = vmatprep.subr.mxu0 0.0
    %132 = vmatpush1.msra.mxu0 %v42
    %133 = vmatprep.subr.mxu0 0.0
    %134 = vmatpush1.msra.mxu0 %v41
    %135 = vmatprep.subr.mxu0 0.0
    %136 = vmatpush1.msra.mxu0 %v40
    %137 = vmatprep.subr.mxu0 0.0
    %138 = vmatpush1.msra.mxu0 %v39
    %139 = vmatprep.subr.mxu0 0.0
    %140 = vmatpush1.msra.mxu0 %v38
    %141 = vmatprep.subr.mxu0 0.0
    %142 = vmatpush1.msra.mxu0 %v37
    %143 = vmatprep.subr.mxu0 0.0
    %144 = vmatpush1.msra.mxu0 %v36
    %145 = vmatprep.subr.mxu0 0.0
    %146 = vmatpush1.msra.mxu0 %v35
    %147 = vmatprep.subr.mxu0 0.0
    %148 = vmatpush1.msra.mxu0 %v34
    %149 = vmatprep.subr.mxu0 0.0
    %150 = vmatpush1.msra.mxu0 %v33
    %151 = vmatprep.subr.mxu0 0.0
    %152 = vmatpush1.msra.mxu0 %v32
    %153 = vmatprep.subr.mxu0 0.0
    %154 = vmatpush1.msra.mxu0 %v31
    %155 = vmatprep.subr.mxu0 0.0
    %156 = vmatpush1.msra.mxu0 %v30
    %157 = vmatprep.subr.mxu0 0.0
    %158 = vmatpush1.msra.mxu0 %v29
    %159 = vmatprep.subr.mxu0 0.0
    %160 = vmatpush1.msra.mxu0 %v28
    %161 = vmatprep.subr.mxu0 0.0
    %162 = vmatpush2.msra.mxu0 0.0
    %163 = vmatprep.subr.mxu0 0.0
    %164 = vmatpush2.msra.mxu0 0.0
    %165 = vmatprep.subr.mxu0 0.0
    %166 = vmatpush2.msra.mxu0 0.0
    %167 = vmatprep.subr.mxu0 0.0
    %168 = vmatpush2.msra.mxu0 0.0
    %169 = vmatprep.subr.mxu0 0.0
    %170 = vmatpush2.msra.mxu0 0.0
    %171 = vmatprep.subr.mxu0 0.0
    %172 = vmatpush2.msra.mxu0 0.0
    %173 = vmatprep.subr.mxu0 0.0
    %174 = vmatpush2.msra.mxu0 0.0
    %175 = vmatprep.subr.mxu0 0.0
    %176 = vmatpush2.msra.mxu0 0.0
    %177 = vmatprep.subr.mxu0 0.0
    %178 = vmatpush2.msra.mxu0 0.0
    %179 = vmatprep.subr.mxu0 0.0
    %180 = vmatpush2.msra.mxu0 0.0
    %181 = vmatprep.subr.mxu0 0.0
    %182 = vmatpush2.msra.mxu0 0.0
    %183 = vmatprep.subr.mxu0 0.0
    %184 = vmatpush2.msra.mxu0 0.0
    %185 = vmatprep.subr.mxu0 0.0
    %186 = vmatpush2.msra.mxu0 0.0
    %187 = vmatprep.subr.mxu0 0.0
    %188 = vmatpush2.msra.mxu0 0.0
    %189 = vmatprep.subr.mxu0 0.0
    %190 = vmatpush2.msra.mxu0 0.0
    %191 = vmatprep.subr.mxu0 0.0
    %192 = vmatpush2.msra.mxu0 0.0
    %193 = vmatprep.mubr.f32.mxu0 0.0
    %194 = vmatmul.mubr.f32.gmra.mxu0 %v124
    %v195 = vpop.f32.mrf.mxu0
    %v196 = vadd.f32 %v128, %v195
    %v197 = vpop.f32.mrf.mxu0
    %198 = vdwg.mxu0
    %199 = vst [vmem:[%s2] sm:$0xff] %v196
    // Predicated region
    $region14: #{network_forward.1} parent=1 // pred_check
      _
    $region15: #{network_forward.1} parent=1 // pred_check_branch
      %201 = sbr.rel (0) target = $region17
    $region16: #{network_forward.1} parent=1 // pred_region
      _
    $region17: #{network_forward.1} parent=1 // pred_fallthru
      _
    // Predicated region
    $region18: #{network_forward.1} parent=1 // pred_check
      _
    $region19: #{network_forward.1} parent=1 // pred_check_branch
      %203 = sbr.rel (0) target = $region21
    $region20: #{network_forward.1} parent=1 // pred_region
      _
    $region21: #{network_forward.1} parent=1 // pred_fallthru
      _
    %204 = vsyncpa [#allocation3], 1

</llo_original>
